<compile_context>
chip_gen: v7x
topology: tpu7x:2x2x1
jax: 0.10.0
libtpu: 0.0.40
codegen_flags: <defaults>
</compile_context>

<pallas_src>
import jax
import jax.numpy as jnp
from jax.experimental import pallas as pl
from jax.experimental.pallas import tpu as pltpu


def _round_up(x, m):
    return (x + m - 1) // m * m


def _make_kernel(K, tk, inv_hw):
    """Builds the kernel with static K / tk / 1/HW baked in as closure consts."""
    k_rem = K % tk  # static: nonzero iff the last K tile is ragged

    def kernel(x_ref, w_ref, b_ref, bin_ref, sat_ref, acc_ref):
        # Grid = (batch tiles [parallel], K tiles [reduction, arbitrary]).
        #   x_ref  : (tb, tk)   activation tile, lane-dense over C*H*W (unpadded HBM)
        #   w_ref  : (nk, tk)   fused weight, fully VMEM-resident, f32
        #   b_ref  : (1, 1)     SMEM bias scalar (f32)
        #   acc_ref: (tb, 1)    f32 running partial sum_{c,s} x * w[c]
        ki = pl.program_id(1)

        @pl.when(ki == 0)
        def _init():
            acc_ref[...] = jnp.zeros_like(acc_ref)

        x = x_ref[...].astype(jnp.float32)
        if k_rem != 0:
            # Mask the out-of-bounds columns of the ragged last K tile: the
            # OOB region of the VMEM block is undefined (zero weight is not
            # enough since 0 * NaN = NaN).  Fully hidden under the x DMA.
            col = jax.lax.broadcasted_iota(jnp.int32, x.shape, 1)
            x = jnp.where(col + ki * tk < K, x, jnp.zeros_like(x))

        # Lane-dense (1, tk) slice of the resident weight for this K step.
        w_tile = w_ref[pl.ds(ki, 1), :]

        # MXU matvec: contract both operands over their lane axis -> (tb, 1).
        acc_ref[...] += jax.lax.dot_general(
            x, w_tile,
            dimension_numbers=(((1,), (1,)), ((), ())),
            preferred_element_type=jnp.float32)

        @pl.when(ki == pl.num_programs(1) - 1)
        def _finalize():
            sigma = acc_ref[...] * inv_hw + b_ref[0, 0]          # (tb, 1) f32
            bin_ref[...] = (sigma > 0.0).astype(jnp.float32)
            sat_ref[...] = jnp.clip(1.2 * jax.nn.sigmoid(sigma) - 0.1, 0.0, 1.0)

    return kernel


def binary_selection_forward(x_nchw, weight, bias, *, x_block_bytes=8 << 20):
    """x_nchw: (B, C, H, W); weight: (1, C); bias: (1,).

    Returns (binary, sat_sigma), both (B, 1) f32 — the PyTorch module's
    eval-mode output tuple.
    """
    B, C, H, W = x_nchw.shape
    HW = H * W
    K = C * HW
    inv_hw = 1.0 / float(HW)

    # NCHW-contiguous reshape: metadata-only, no HBM copy.  (If the activation
    # arrived in another layout, build w_flat to match it instead.)
    x2d = x_nchw.reshape(B, K)
    itemsize = jnp.dtype(x2d.dtype).itemsize

    # Batch tile: at least 2 tiles whenever sublane alignment allows, so the
    # "parallel" batch axis shards across v7x's two TensorCores.
    if B <= 8:
        tb = B                                  # single tile; full-dim block
    elif B <= 256:
        tb = _round_up(pl.cdiv(B, 2), 8)        # exactly 2 batch tiles
    else:
        tb = 128

    # K tile: lane-aligned, ~x_block_bytes per x buffer.  Double-buffered x
    # (2 x 8 MiB) + resident weight + outputs stay well under the explicit
    # 32 MiB scoped-VMEM limit on every generation (v7x cap honored).
    tk_cap = _round_up(K, 128)
    tk = (x_block_bytes // (tb * itemsize)) // 128 * 128
    tk = max(128, min(tk, tk_cap))
    k_pad = _round_up(K, tk)
    nk = k_pad // tk

    # Fused weight, lane-dense and f32 end-to-end: w_flat[c*HW + s] = w[c].
    # (1/HW and bias are applied in f32 in the finalize step.)  Only this tiny
    # array is zero-padded; the activations are never copied.
    w_flat = jnp.repeat(weight.reshape(C).astype(jnp.float32), HW)
    w_flat = jnp.pad(w_flat, (0, k_pad - K)).reshape(nk, tk)

    b_smem = bias.reshape(1, 1).astype(jnp.float32)

    grid = (pl.cdiv(B, tb), nk)

    out_shapes = (
        jax.ShapeDtypeStruct((B, 1), jnp.float32),
        jax.ShapeDtypeStruct((B, 1), jnp.float32),
    )

    binary, sat = pl.pallas_call(
        _make_kernel(K, tk, inv_hw),
        out_shape=out_shapes,
        grid_spec=pltpu.PrefetchScalarGridSpec(
            num_scalar_prefetch=0,
            grid=grid,
            in_specs=[
                pl.BlockSpec((tb, tk), lambda bi, ki: (bi, ki)),
                # Whole fused weight resident in VMEM (constant index_map =>
                # DMA'd once per call), sliced per K step inside the kernel.
                pl.BlockSpec((nk, tk), lambda bi, ki: (0, 0)),
                pl.BlockSpec(memory_space=pltpu.SMEM),
            ],
            out_specs=[
                pl.BlockSpec((tb, 1), lambda bi, ki: (bi, 0)),
                pl.BlockSpec((tb, 1), lambda bi, ki: (bi, 0)),
            ],
            scratch_shapes=[pltpu.VMEM((tb, 1), jnp.float32)],
        ),
        compiler_params=pltpu.CompilerParams(
            dimension_semantics=("parallel", "arbitrary"),
            vmem_limit_bytes=32 * 1024 * 1024,
        ),
    )(x2d, w_flat, b_smem)

    return binary, sat


def _reference(x_nchw, weight, bias):
    gap = jnp.mean(x_nchw, axis=(2, 3))                          # (B, C)
    sigma = gap @ weight.reshape(1, -1).T + bias                 # (B, 1)
    binary = (sigma > 0.0).astype(jnp.float32)
    sat = jnp.clip(1.2 * jax.nn.sigmoid(sigma) - 0.1, 0.0, 1.0)
    return binary, sat


def _run_case(key, B, C, H, W, **kwargs):
    kx, kw, kb = jax.random.split(key, 3)
    x = jax.random.normal(kx, (B, C, H, W), dtype=jnp.float32)

    # nn.Linear(C, 1)-style init: U(-1/sqrt(C), 1/sqrt(C)).
    bound = 1.0 / (C ** 0.5)
    weight = jax.random.uniform(kw, (1, C), minval=-bound, maxval=bound,
                                dtype=jnp.float32)
    bias = jax.random.uniform(kb, (1,), minval=-bound, maxval=bound,
                              dtype=jnp.float32)

    binary, sat = binary_selection_forward(x, weight, bias, **kwargs)
    jax.block_until_ready((binary, sat))

    ref_binary, ref_sat = _reference(x, weight, bias)
    assert binary.shape == (B, 1) and sat.shape == (B, 1)
    assert jnp.allclose(binary, ref_binary)
    assert jnp.allclose(sat, ref_sat, atol=1e-5, rtol=1e-5)


if __name__ == "__main__":
    key = jax.random.PRNGKey(0)
    k1, k2, k3 = jax.random.split(key, 3)

    # Small canonical shape (single K tile, tiny batch).
    _run_case(k1, B=2, C=4, H=16, W=16)
    # Ragged K tile (H*W = 49 not a multiple of 128) + non-multiple-of-8 batch.
    _run_case(k2, B=3, C=16, H=7, W=7)
    # Multi K-tile accumulation + ragged last K tile + 2 batch tiles (ragged
    # last batch tile) — small x_block_bytes forces multiple grid steps.
    _run_case(k3, B=20, C=8, H=14, W=14, x_block_bytes=64 * 1024)

    print("KERNEL_OK")
</pallas_src>

<mosaic_0001>
module attributes {stable_mosaic.version = 11 : i64} {
  func.func @kernel(%arg0: i32, %arg1: i32, %arg2: memref<2x1024xf32, #tpu.memory_space<vmem>>, %arg3: memref<1x1024xf32, #tpu.memory_space<vmem>>, %arg4: memref<1x1xf32, #tpu.memory_space<smem>>, %arg5: memref<2x1xf32, #tpu.memory_space<vmem>>, %arg6: memref<2x1xf32, #tpu.memory_space<vmem>>, %arg7: memref<2x1xf32, #tpu.memory_space<vmem>>) attributes {dimension_semantics = [#tpu.dimension_semantics<parallel>, #tpu.dimension_semantics<arbitrary>], iteration_bounds = array<i64: 1, 1>, scalar_prefetch = 0 : i64, scratch_operands = 1 : i64, tpu.core_type = #tpu.core_type<tc>, window_params = [{transform_indices = @transform_0, window_bounds = array<i64: 2, 1024>}, {pipeline_mode = #tpu.pipeline_mode<synchronous>, transform_indices = @transform_1, window_bounds = array<i64: 1, 1024>}, {transform_indices = @transform_2, window_bounds = array<i64: 1, 1>}, {transform_indices = @transform_3, window_bounds = array<i64: 2, 1>}, {transform_indices = @transform_4, window_bounds = array<i64: 2, 1>}]} {
    %c0_i32 = arith.constant 0 : i32
    %0 = arith.cmpi eq, %arg1, %c0_i32 : i32
    %1 = arith.extui %0 : i1 to i32
    %c0_i32_0 = arith.constant 0 : i32
    %2 = arith.cmpi ne, %1, %c0_i32_0 : i32
    scf.if %2 {
      %cst_9 = arith.constant 0.000000e+00 : f32
      %13 = vector.broadcast %cst_9 : f32 to vector<2x1xf32>
      %c0_10 = arith.constant 0 : index
      %c0_11 = arith.constant 0 : index
      %14 = vector.load %arg7[%c0_10, %c0_11] : memref<2x1xf32, #tpu.memory_space<vmem>>, vector<2x1xf32>
      tpu.vector_store %arg7[%c0_10, %c0_11], %13 {strides = array<i32>} : memref<2x1xf32, #tpu.memory_space<vmem>>, vector<2x1xf32>,
    } else {
    }
    %c0 = arith.constant 0 : index
    %c0_1 = arith.constant 0 : index
    %3 = vector.load %arg2[%c0, %c0_1] : memref<2x1024xf32, #tpu.memory_space<vmem>>, vector<2x1024xf32>
    %4 = arith.index_cast %arg1 : i32 to index
    %c0_2 = arith.constant 0 : index
    %5 = vector.load %arg3[%4, %c0_2] : memref<1x1024xf32, #tpu.memory_space<vmem>>, vector<1x1024xf32>
    %c0_3 = arith.constant 0 : index
    %c0_4 = arith.constant 0 : index
    %6 = vector.load %arg7[%c0_3, %c0_4] : memref<2x1xf32, #tpu.memory_space<vmem>>, vector<2x1xf32>
    %cst = arith.constant dense<0.000000e+00> : vector<2x1xf32>
    %7 = tpu.matmul %3, %5, %cst {dimension_numbers = #tpu.dot_dimension_numbers<[1], [1], [0], [0], [0, 0, 1, 0], [], []>} : vector<2x1024xf32>, vector<1x1024xf32>, vector<2x1xf32> -> vector<2x1xf32>
    %8 = arith.addf %6, %7 : vector<2x1xf32>
    %c0_5 = arith.constant 0 : index
    %c0_6 = arith.constant 0 : index
    %9 = vector.load %arg7[%c0_5, %c0_6] : memref<2x1xf32, #tpu.memory_space<vmem>>, vector<2x1xf32>
    tpu.vector_store %arg7[%c0_5, %c0_6], %8 {strides = array<i32>} : memref<2x1xf32, #tpu.memory_space<vmem>>, vector<2x1xf32>,
    %c0_i32_7 = arith.constant 0 : i32
    %10 = arith.cmpi eq, %arg1, %c0_i32_7 : i32
    %11 = arith.extui %10 : i1 to i32
    %c0_i32_8 = arith.constant 0 : i32
    %12 = arith.cmpi ne, %11, %c0_i32_8 : i32
    scf.if %12 {
      %c0_9 = arith.constant 0 : index
      %c0_10 = arith.constant 0 : index
      %13 = vector.load %arg7[%c0_9, %c0_10] : memref<2x1xf32, #tpu.memory_space<vmem>>, vector<2x1xf32>
      %cst_11 = arith.constant 3.906250e-03 : f32
      %14 = vector.broadcast %cst_11 : f32 to vector<2x1xf32>
      %15 = arith.mulf %13, %14 : vector<2x1xf32>
      %c0_12 = arith.constant 0 : index
      %c0_13 = arith.constant 0 : index
      %16 = memref.load %arg4[%c0_12, %c0_13] : memref<1x1xf32, #tpu.memory_space<smem>>
      %17 = vector.broadcast %16 : f32 to vector<2x1xf32>
      %18 = arith.addf %15, %17 : vector<2x1xf32>
      %cst_14 = arith.constant 0.000000e+00 : f32
      %19 = vector.broadcast %cst_14 : f32 to vector<2x1xf32>
      %20 = arith.cmpf ogt, %18, %19 : vector<2x1xf32>
      %21 = arith.extui %20 : vector<2x1xi1> to vector<2x1xi32>
      %22 = arith.sitofp %21 : vector<2x1xi32> to vector<2x1xf32>
      %c0_15 = arith.constant 0 : index
      %c0_16 = arith.constant 0 : index
      %23 = vector.load %arg5[%c0_15, %c0_16] : memref<2x1xf32, #tpu.memory_space<vmem>>, vector<2x1xf32>
      tpu.vector_store %arg5[%c0_15, %c0_16], %22 {strides = array<i32>} : memref<2x1xf32, #tpu.memory_space<vmem>>, vector<2x1xf32>,
      %24 = arith.negf %18 : vector<2x1xf32>
      %25 = math.exp %24 : vector<2x1xf32>
      %cst_17 = arith.constant 1.000000e+00 : f32
      %26 = vector.broadcast %cst_17 : f32 to vector<2x1xf32>
      %27 = arith.addf %26, %25 : vector<2x1xf32>
      %28 = arith.divf %26, %27 : vector<2x1xf32>
      %cst_18 = arith.constant 1.200000e+00 : f32
      %29 = vector.broadcast %cst_18 : f32 to vector<2x1xf32>
      %30 = arith.mulf %29, %28 : vector<2x1xf32>
      %cst_19 = arith.constant 1.000000e-01 : f32
      %31 = vector.broadcast %cst_19 : f32 to vector<2x1xf32>
      %32 = arith.subf %30, %31 : vector<2x1xf32>
      %cst_20 = arith.constant 0.000000e+00 : f32
      %cst_21 = arith.constant 1.000000e+00 : f32
      %33 = vector.broadcast %cst_20 : f32 to vector<2x1xf32>
      %34 = arith.maximumf %33, %32 : vector<2x1xf32>
      %35 = vector.broadcast %cst_21 : f32 to vector<2x1xf32>
      %36 = arith.minimumf %35, %34 : vector<2x1xf32>
      %c0_22 = arith.constant 0 : index
      %c0_23 = arith.constant 0 : index
      %37 = vector.load %arg6[%c0_22, %c0_23] : memref<2x1xf32, #tpu.memory_space<vmem>>, vector<2x1xf32>
      tpu.vector_store %arg6[%c0_22, %c0_23], %36 {strides = array<i32>} : memref<2x1xf32, #tpu.memory_space<vmem>>, vector<2x1xf32>,
    } else {
    }
    return
  }
  func.func @transform_0(%arg0: i32, %arg1: i32) -> (i32, i32) {
    %c0_i32 = arith.constant 0 : i32
    return %arg0, %arg1 : i32, i32
  }
  func.func @transform_1(%arg0: i32, %arg1: i32) -> (i32, i32) {
    %c0_i32 = arith.constant 0 : i32
    %c0_i32_0 = arith.constant 0 : i32
    %c0_i32_1 = arith.constant 0 : i32
    return %c0_i32, %c0_i32_0 : i32, i32
  }
  func.func @transform_2(%arg0: i32, %arg1: i32) -> (i32, i32) {
    %c0_i32 = arith.constant 0 : i32
    %c0_i32_0 = arith.constant 0 : i32
    %c0_i32_1 = arith.constant 0 : i32
    return %c0_i32, %c0_i32_0 : i32, i32
  }
  func.func @transform_3(%arg0: i32, %arg1: i32) -> (i32, i32) {
    %c0_i32 = arith.constant 0 : i32
    %c0_i32_0 = arith.constant 0 : i32
    return %arg0, %c0_i32 : i32, i32
  }
  func.func @transform_4(%arg0: i32, %arg1: i32) -> (i32, i32) {
    %c0_i32 = arith.constant 0 : i32
    %c0_i32_0 = arith.constant 0 : i32
    return %arg0, %c0_i32 : i32, i32
  }
}

</mosaic_0001>

<llo_original>
// kernel: tpu_custom_call.1
$region0: #{tpu_custom_call.1}
  #allocation0 [shape = 'u32[]', space=smem, size = 0x4, offset = 0x4, fixed_abs, tag = 'smem constant byte address 0x4 - core index']
  #allocation1 [shape = 'u32[144,128]{1,0:T(1,128)}', space=vmem, size = 0x12000, scoped, tag = 'internal scratch']
  #allocation2 [shape = 'f32[2,1]{1,0:T(2,128)}', space=vmem, size = 0x400, scoped, tag = 'scratch operand']
  #allocation3 [shape = 'f32[1,1]{1,0:T(1,128)S(6)}', space=smem, size = 0x200, scoped, tag = 'scoped memory for tpu_custom_call.1']
  %s0 = inlined_call_operand.hbm [shape: f32[2,1024], index: 0, kind: input, shape index: {}]
  %s1 = inlined_call_operand.hbm [shape: f32[1,1024], index: 1, kind: input, shape index: {}]
  %s2 = inlined_call_operand.<no memory space> [shape: f32[1,1], index: 2, kind: input, shape index: {}]
  %s3 = inlined_call_operand.vmem [shape: f32[2,1], index: 3, kind: output, shape index: {0}]
  %s4 = inlined_call_operand.vmem [shape: f32[2,1], index: 4, kind: output, shape index: {1}]
  %5 = xla_tuple %s3, %s4
  %s6 = sld [smem:[#allocation0]]
  $region46: #{tpu_custom_call.1} parent=0
    _
  %s8 = ssub.s32 1, %s6
  %s9 = scalar_select 0, %s8, %s6
  %10 = sst [smem:[#allocation3]] %s2
  $region1: #{tpu_custom_call.1} parent=0
    #allocation4 [shape = 'u8[8192]{0}', space=vmem, size = 0x2000, scoped, tag = 'input window, operand 0, single buffered']
    #allocation5 [shape = 's32[1]{0}', space=sflag, size = 0x4, scoped, tag = 'scoped memory for tpu_custom_call.1']
    #allocation6 [shape = 'u8[4096]{0}', space=vmem, size = 0x1000, scoped, tag = 'input window, operand 1, single buffered']
    #allocation7 [shape = 's32[1]{0}', space=sflag, size = 0x4, scoped, tag = 'scoped memory for tpu_custom_call.1']
    %11 = vsyncpa [#allocation5], 0
    %12 = vsyncpa [#allocation7], 0
    // Predicated region
    $region2: #{tpu_custom_call.1} parent=1 // pred_check
      _
    $region3: #{tpu_custom_call.1} parent=1 // pred_check_branch
      %14 = sbr.rel (0) target = $region5
    $region4: #{tpu_custom_call.1} parent=1 // pred_region
      %s16 = ssub.s32 256, 256
      %17 = vsyncadd [#allocation5], %s16
      %s19 = sshll.u32 [#allocation4], 4
      %s20 = int_to_ptr.vmem [resolvable:$true] %s19
      %22 = dma.hbm_to_vmem [thread:$0]  %s0, 256, %s20, [#allocation5]
    $region5: #{tpu_custom_call.1} parent=1 // pred_fallthru
      _
    // Predicated region
    $region6: #{tpu_custom_call.1} parent=1 // pred_check
      _
    $region7: #{tpu_custom_call.1} parent=1 // pred_check_branch
      %24 = sbr.rel (0) target = $region9
    $region8: #{tpu_custom_call.1} parent=1 // pred_region
      %s26 = ssub.s32 128, 128
      %27 = vsyncadd [#allocation7], %s26
      %s29 = sshll.u32 [#allocation6], 4
      %s30 = int_to_ptr.vmem [resolvable:$true] %s29
      %32 = dma.hbm_to_vmem [thread:$0]  %s1, 128, %s30, [#allocation7]
    $region9: #{tpu_custom_call.1} parent=1 // pred_fallthru
      _
    // Predicated region
    $region10: #{tpu_custom_call.1} parent=1 // pred_check
      _
    $region11: #{tpu_custom_call.1} parent=1 // pred_check_branch
      %34 = sbr.rel (0) target = $region13
    $region12: #{tpu_custom_call.1} parent=1 // pred_region
      _
    $region13: #{tpu_custom_call.1} parent=1 // pred_fallthru
      _
    // Predicated region
    $region14: #{tpu_custom_call.1} parent=1 // pred_check
      _
    $region15: #{tpu_custom_call.1} parent=1 // pred_check_branch
      %36 = sbr.rel (0) target = $region17
    $region16: #{tpu_custom_call.1} parent=1 // pred_region
      %37 = dma.done [#allocation5], 256
    $region17: #{tpu_custom_call.1} parent=1 // pred_fallthru
      _
    // Predicated region
    $region18: #{tpu_custom_call.1} parent=1 // pred_check
      _
    $region19: #{tpu_custom_call.1} parent=1 // pred_check_branch
      %39 = sbr.rel (0) target = $region21
    $region20: #{tpu_custom_call.1} parent=1 // pred_region
      %40 = dma.done [#allocation7], 128
    $region21: #{tpu_custom_call.1} parent=1 // pred_fallthru
      _
    %p41 = scmp.eq.s32.totalorder 0, 0
    // Predicated region
    $region22: #{tpu_custom_call.1} parent=1 // pred_check
      %p42 = pneg %p41
    $region23: #{tpu_custom_call.1} parent=1 // pred_check_branch
      %44 = sbr.rel (%p42) target = $region25
    $region24: #{tpu_custom_call.1} parent=1 // pred_region
      %vm45 = vcmask 1024
      %46 = vst.msk [vmem:[#allocation2] sm:$0x3] %vm45, 0.0
    $region25: #{tpu_custom_call.1} parent=1 // pred_fallthru
      _
    %v47 = vld [vmem:[#allocation4] sm:$0xff]
    %v48 = vld [vmem:[#allocation4 + $0x8] sm:$0xff]
    %s49 = smul.u32 0, 8
    %s50 = scalar_lea.vmem [#allocation6], %s49
    %v51 = vld [vmem:[%s50] sm:$0xff]
    %v52 = vld [vmem:[#allocation2] sm:$0x3]
    %v54 = vlaneseq
    %v55 = vshrl.u32 %v54, 7
    %v56 = vsub.s32 0, %v55
    %v57 = vrot.slane %v51, %v56
    %v58 = vlaneseq
    %v59 = vshrl.u32 %v58, 7
    %v60 = vsub.s32 1, %v59
    %v61 = vrot.slane %v51, %v60
    %v62 = vlaneseq
    %v63 = vshrl.u32 %v62, 7
    %v64 = vsub.s32 2, %v63
    %v65 = vrot.slane %v51, %v64
    %v66 = vlaneseq
    %v67 = vshrl.u32 %v66, 7
    %v68 = vsub.s32 3, %v67
    %v69 = vrot.slane %v51, %v68
    %v70 = vlaneseq
    %v71 = vshrl.u32 %v70, 7
    %v72 = vsub.s32 4, %v71
    %v73 = vrot.slane %v51, %v72
    %v74 = vlaneseq
    %v75 = vshrl.u32 %v74, 7
    %v76 = vsub.s32 5, %v75
    %v77 = vrot.slane %v51, %v76
    %v78 = vlaneseq
    %v79 = vshrl.u32 %v78, 7
    %v80 = vsub.s32 6, %v79
    %v81 = vrot.slane %v51, %v80
    %v82 = vlaneseq
    %v83 = vshrl.u32 %v82, 7
    %v84 = vsub.s32 7, %v83
    %v85 = vrot.slane %v51, %v84
    %v86 = vcombine.low %v57, %v61
    %v87 = vcombine.low %v65, %v69
    %v89 = vunpack.c.l.s4 1983009808
    %v90 = vunpack.c.0.s8 %v89
    %v91 = vlaneseq
    %v92 = vshrl.u32 %v91, 7
    %v93 = vsub.s32 %v90, %v92
    %v94 = vrot.slane %v86, %v93
    %v96 = vunpack.c.l.s4 1983009808
    %v97 = vunpack.c.0.s8 %v96
    %v98 = vlaneseq
    %v99 = vshrl.u32 %v98, 7
    %v100 = vsub.s32 %v97, %v99
    %v101 = vrot.slane %v87, %v100
    %v102 = vcombine.low %v94, %v101
    %v103 = vcombine.low %v73, %v77
    %v104 = vcombine.low %v81, %v85
    %v106 = vunpack.c.l.s4 1983009808
    %v107 = vunpack.c.0.s8 %v106
    %v108 = vlaneseq
    %v109 = vshrl.u32 %v108, 7
    %v110 = vsub.s32 %v107, %v109
    %v111 = vrot.slane %v103, %v110
    %v113 = vunpack.c.l.s4 1983009808
    %v114 = vunpack.c.0.s8 %v113
    %v115 = vlaneseq
    %v116 = vshrl.u32 %v115, 7
    %v117 = vsub.s32 %v114, %v116
    %v118 = vrot.slane %v104, %v117
    %v119 = vcombine.low %v111, %v118
    %v122 = vmul.f32 %v47, %v102
    %v123 = vmul.f32 %v48, %v119
    %v126 = vcombine.high %v122, %v122
    %v128 = vunpack.c.l.s4 1983009808
    %v129 = vunpack.c.0.s8 %v128
    %v130 = vlaneseq
    %v131 = vshrl.u32 %v130, 7
    %v132 = vsub.s32 %v129, %v131
    %v133 = vrot.slane %v122, %v132
    %v135 = vunpack.c.l.s4 1983009808
    %v136 = vunpack.c.0.s8 %v135
    %v137 = vlaneseq
    %v138 = vshrl.u32 %v137, 7
    %v139 = vsub.s32 %v136, %v138
    %v140 = vrot.slane %v126, %v139
    %v141 = vcombine.high %v133, %v133
    %v142 = vcombine.high %v140, %v140
    %v143 = vcombine.high %v123, %v123
    %v145 = vunpack.c.l.s4 1983009808
    %v146 = vunpack.c.0.s8 %v145
    %v147 = vlaneseq
    %v148 = vshrl.u32 %v147, 7
    %v149 = vsub.s32 %v146, %v148
    %v150 = vrot.slane %v123, %v149
    %v152 = vunpack.c.l.s4 1983009808
    %v153 = vunpack.c.0.s8 %v152
    %v154 = vlaneseq
    %v155 = vshrl.u32 %v154, 7
    %v156 = vsub.s32 %v153, %v155
    %v157 = vrot.slane %v143, %v156
    %v158 = vcombine.high %v150, %v150
    %v159 = vcombine.high %v157, %v157
    %vm168 = vcmask 1041408
    %v169 = vsel %vm168, %v133, 0.0
    %v170 = vsel %vm168, %v141, 0.0
    %v171 = vadd.f32 %v169, %v170
    %v172 = vsel %vm168, %v140, 0.0
    %v173 = vadd.f32 %v171, %v172
    %v174 = vsel %vm168, %v142, 0.0
    %v175 = vadd.f32 %v173, %v174
    %v176 = vsel %vm168, %v150, 0.0
    %v177 = vadd.f32 %v175, %v176
    %v178 = vsel %vm168, %v158, 0.0
    %v179 = vadd.f32 %v177, %v178
    %v180 = vsel %vm168, %v157, 0.0
    %v181 = vadd.f32 %v179, %v180
    %v182 = vsel %vm168, %v159, 0.0
    %v183 = vadd.f32 %v181, %v182
    %184 = vadd.xlane.f32.xlu0 %v183
    %v185 = vpop.xlane.xlu0 %184
    %v186 = vadd.f32 %v52, %v185
    %vm187 = vcmask 1024
    %188 = vst.msk [vmem:[#allocation2] sm:$0x3] %vm187, %v186
    // Predicated region
    $region26: #{tpu_custom_call.1} parent=1 // pred_check
      %p189 = pneg %p41
    $region27: #{tpu_custom_call.1} parent=1 // pred_check_branch
      %191 = sbr.rel (%p189) target = $region29
    $region28: #{tpu_custom_call.1} parent=1 // pred_region
      %v192 = vld [vmem:[#allocation2] sm:$0x3]
      %v193 = vmul.f32 %v192, 0.00390625
      %s194 = sld [smem:[#allocation3]]
      %v195 = vstv %s194
      %v196 = vadd.f32 %v193, %v195
      %vm197 = vcmp.gt.f32.partialorder %v196, 0.0
      %v198 = vsel %vm197, 1, 0
      %v199 = vcvt.s32.f32 %v198
      %200 = vst.msk [vmem:[%s3] sm:$0x3] %vm187, %v199
      %v201 = vxor.u32 %v196, 2147483648
      %v202 = vmul.f32 %v201, 1.442695
      %v203 = vpow.pop %v202
      %v204 = vadd.f32 %v203, 1.0
      %v205 = vrcp.pop %v204
      %v206 = vmul.f32 1.0, %v205
      %v207 = vmul.f32 %v206, 1.2
      %v208 = vsub.f32 %v207, 0.1
      %v209 = vmax.f32 %v208, 0.0
      %v210 = vmin.f32 %v209, 1.0
      %211 = vst.msk [vmem:[%s4] sm:$0x3] %vm187, %v210
    $region29: #{tpu_custom_call.1} parent=1 // pred_fallthru
      _
    // Predicated region
    $region30: #{tpu_custom_call.1} parent=1 // pred_check
      _
    $region31: #{tpu_custom_call.1} parent=1 // pred_check_branch
      %213 = sbr.rel (0) target = $region33
    $region32: #{tpu_custom_call.1} parent=1 // pred_region
      _
    $region33: #{tpu_custom_call.1} parent=1 // pred_fallthru
      _
    // Predicated region
    $region34: #{tpu_custom_call.1} parent=1 // pred_check
      _
    $region35: #{tpu_custom_call.1} parent=1 // pred_check_branch
      %215 = sbr.rel (0) target = $region37
    $region36: #{tpu_custom_call.1} parent=1 // pred_region
      _
    $region37: #{tpu_custom_call.1} parent=1 // pred_fallthru
      _
    // Predicated region
    $region38: #{tpu_custom_call.1} parent=1 // pred_check
      _
    $region39: #{tpu_custom_call.1} parent=1 // pred_check_branch
      %217 = sbr.rel (0) target = $region41
    $region40: #{tpu_custom_call.1} parent=1 // pred_region
      _
    $region41: #{tpu_custom_call.1} parent=1 // pred_fallthru
      _
    // Predicated region
    $region42: #{tpu_custom_call.1} parent=1 // pred_check
      _
    $region43: #{tpu_custom_call.1} parent=1 // pred_check_branch
      %219 = sbr.rel (0) target = $region45
    $region44: #{tpu_custom_call.1} parent=1 // pred_region
      _
    $region45: #{tpu_custom_call.1} parent=1 // pred_fallthru
      _
    %220 = vsyncpa [#allocation5], 1
    %221 = vsyncpa [#allocation7], 1

</llo_original>
